<compile_context>
chip_gen: v7x
topology: tpu7x:2x2x1
jax: 0.10.0
libtpu: 0.0.40
codegen_flags: <defaults>
</compile_context>

<pallas_src>
import jax
import jax.numpy as jnp
import numpy as np
from jax.experimental import pallas as pl
from jax.experimental.pallas import tpu as pltpu

_MiB = 1024 * 1024


def _vmem_params():
    """Generation-aware (vmem_limit_bytes, working-set budget_bytes)."""
    try:
        info = pltpu.get_tpu_info()
        cap = int(getattr(info, "vmem_capacity_bytes", 0) or 0)
    except Exception:
        cap = 0
    if cap == 0 or cap < 96 * _MiB:
        # v7x-class parts (64 MiB physical VMEM per TC) or unknown -> be safe.
        return 48 * _MiB, 24 * _MiB
    # v5e / v6e: 128 MiB physical VMEM -> take bigger steps.
    return 64 * _MiB, 40 * _MiB


def _largest_divisor_leq(m, cap):
    """Largest divisor of m that is <= cap (>= 1)."""
    cap = int(max(1, min(m, cap)))
    best = 1
    i = 1
    while i * i <= m:
        if m % i == 0:
            lo, hi = i, m // i
            if lo <= cap and lo > best:
                best = lo
            if hi <= cap and hi > best:
                best = hi
        i += 1
    return best


def _choose_tiles(pre, post, S, itemsize, budget_bytes):
    """Pick (tp, tc, n_col): row tile and column tile (tc | post, tc % 128 == 0).

    Working set per step ~= 2 buffers * (S inputs + 1 output) * tp*tc*itemsize,
    kept <= budget_bytes.  Within that, tiles are made as large as possible so
    per-step HBM traffic (~2*tp*tc*itemsize) amortizes the fixed ~0.35 us
    pipeline overhead (matters most at v7x's ~3.2 TB/s).
    """
    sub = 8 * max(1, 4 // itemsize)          # 8 (f32) / 16 (bf16) / 32 (i8)
    per_block = budget_bytes // (2 * (S + 1))
    per_block = max(per_block, sub * 128 * itemsize)

    if post * itemsize * sub <= per_block:
        # Full-width rows: fully contiguous HBM reads, row-only tiling.
        tc = post
        tp = min(pre, per_block // (post * itemsize))
        if tp < pre:
            tp = max(sub, (tp // sub) * sub)
        n_col = 1
    else:
        # `post` too wide for the VMEM budget -> tile columns as well.
        max_rows = max(sub, (per_block // (128 * itemsize) // sub) * sub)
        tp = pre if pre <= max_rows else min(256, max_rows)
        if tp < pre:
            tp = max(sub, (tp // sub) * sub)
        tp_pad = ((tp + sub - 1) // sub) * sub
        cap_units = max(1, per_block // (tp_pad * itemsize * 128))
        d = _largest_divisor_leq(post // 128, cap_units)
        tc = 128 * d
        n_col = post // tc
    return int(tp), int(tc), int(n_col)


def _stack_copy_kernel(*refs):
    """refs = (in_0, ..., in_{S-1}, out).  Grid = (row_tile, col_tile, S).

    Each step copies one (tp, tc) tile of exactly one input into its
    lane-dense column slab of the (pre, S*post) output (unmasked full-width
    stores).  Input block indices are independent of the innermost S axis,
    so each input tile is fetched from HBM exactly once per (row, col).
    """
    in_refs = refs[:-1]
    out_ref = refs[-1]
    s = pl.program_id(2)
    for k, r in enumerate(in_refs):
        @pl.when(s == k)
        def _(r=r):
            out_ref[...] = r[...]


def pallas_stack(tensor_list, axis, _budget_override=None):
    """Equivalent of torch.stack(tensor_list, dim=axis) on TPU via Pallas."""
    tensor_list = list(tensor_list)
    S = len(tensor_list)
    assert S >= 1
    shape = tuple(tensor_list[0].shape)
    dtype = tensor_list[0].dtype
    for t in tensor_list:
        assert tuple(t.shape) == shape and t.dtype == dtype, "all inputs must match"

    ndim = len(shape)
    out_ndim = ndim + 1
    ax = axis if axis >= 0 else axis + out_ndim
    assert 0 <= ax <= ndim, f"bad axis {axis} for ndim {ndim}"

    pre = int(np.prod(shape[:ax], dtype=np.int64)) if ax > 0 else 1
    post = int(np.prod(shape[ax:], dtype=np.int64)) if ax < ndim else 1
    itemsize = np.dtype(dtype).itemsize

    # Narrow / ragged `post` (e.g. axis == ndim -> post == 1) would force
    # masked sub-128-lane stores that saturate the single vst port while HBM
    # sits idle; XLA's native concatenate is faster there.  Zero-size bails too.
    # TODO(synk): lane-dense Pallas path for large `post` not a multiple of 128
    # (pad to 128-aligned column tiles, mask only the ragged tail tile).
    if post % 128 != 0 or pre == 0 or post == 0:
        return jnp.stack(tensor_list, axis=ax)

    vmem_limit, budget = _vmem_params()
    if _budget_override is not None:
        budget = int(_budget_override)
    tp, tc, n_col = _choose_tiles(pre, post, S, itemsize, budget)

    flat = [t.reshape(pre, post) for t in tensor_list]
    grid = (pl.cdiv(pre, tp), n_col, S)

    in_specs = [pl.BlockSpec((tp, tc), lambda i, j, s: (i, j)) for _ in range(S)]
    # Output columns for (input s, column tile j) start at s*post + j*tc;
    # since tc | post, the block index is s*n_col + j.
    out_specs = pl.BlockSpec((tp, tc), lambda i, j, s, n=n_col: (i, s * n + j))

    total_bytes = S * pre * post * itemsize
    stacked = pl.pallas_call(
        _stack_copy_kernel,
        out_shape=jax.ShapeDtypeStruct((pre, S * post), dtype),
        grid=grid,
        in_specs=in_specs,
        out_specs=out_specs,
        compiler_params=pltpu.CompilerParams(
            # Row/column tiles are independent -> megacore can split them;
            # the S axis revisits the same input blocks, keep it "arbitrary".
            # TODO(synk): evaluate pltpu.CORE_PARALLEL on axis 0 for v7x.
            dimension_semantics=("parallel", "parallel", "arbitrary"),
            vmem_limit_bytes=vmem_limit,
        ),
        # Pure streaming copy: tell XLA it is memory-bound, not compute-bound.
        cost_estimate=pl.CostEstimate(
            flops=0, transcendentals=0, bytes_accessed=2 * total_bytes),
    )(*flat)

    final_shape = shape[:ax] + (S,) + shape[ax:]
    return stacked.reshape(final_shape)


class Stack:
    """Mirror of leanai Stack module; forward = pallas_stack."""

    def __init__(self, axis):
        self.axis = axis

    def __call__(self, *tensor_list):
        return pallas_stack(tensor_list, self.axis)


if __name__ == "__main__":
    key = jax.random.PRNGKey(0)
    k1, k2, k3 = jax.random.split(key, 3)

    # Small NCHW inputs: batch=2, channels=4, spatial=16x16, S=3 tensors.
    shape = (2, 4, 16, 16)
    x0 = jax.random.normal(k1, shape, dtype=jnp.float32)
    x1 = jax.random.normal(k2, shape, dtype=jnp.float32)
    x2 = jax.random.normal(k3, shape, dtype=jnp.float32)

    # axis=1/0/2 hit the lane-dense Pallas fast path; axis=4 (== ndim,
    # post == 1) takes the jnp.stack fallback.
    for ax in (1, 0, 2, 4):
        out = jax.block_until_ready(Stack(axis=ax)(x0, x1, x2))
        ref = jnp.stack([x0, x1, x2], axis=ax)
        assert out.shape == ref.shape, (ax, out.shape, ref.shape)
        assert out.dtype == ref.dtype
        np.testing.assert_array_equal(np.asarray(out), np.asarray(ref))

    # bf16 coverage (sublane multiple 16 path).
    xb0 = x0.astype(jnp.bfloat16)
    xb1 = x1.astype(jnp.bfloat16)
    outb = jax.block_until_ready(Stack(axis=1)(xb0, xb1))
    refb = jnp.stack([xb0, xb1], axis=1)
    np.testing.assert_array_equal(
        np.asarray(outb, dtype=np.float32), np.asarray(refb, dtype=np.float32))

    # Exercise the column-tiling branch (post too wide for the budget) with a
    # deliberately tiny budget override so the test stays small: pre=1.
    ka, kb = jax.random.split(key)
    a0 = jax.random.normal(ka, (32, 512), dtype=jnp.float32)
    a1 = jax.random.normal(kb, (32, 512), dtype=jnp.float32)
    outa = jax.block_until_ready(
        pallas_stack([a0, a1], axis=0, _budget_override=64 * 1024))
    np.testing.assert_array_equal(
        np.asarray(outa), np.asarray(jnp.stack([a0, a1], axis=0)))

    # Exercise multi-row-tile pipelining with a partial last row tile.
    b0 = jax.random.normal(ka, (72, 256), dtype=jnp.float32)
    b1 = jax.random.normal(kb, (72, 256), dtype=jnp.float32)
    outb2 = jax.block_until_ready(
        pallas_stack([b0, b1], axis=1, _budget_override=96 * 1024))
    np.testing.assert_array_equal(
        np.asarray(outb2), np.asarray(jnp.stack([b0, b1], axis=1)))

    # Ragged-post fallback (post not a multiple of 128).
    y0 = jax.random.normal(ka, (16, 24), dtype=jnp.float32)
    y1 = jax.random.normal(kb, (16, 24), dtype=jnp.float32)
    outy = jax.block_until_ready(Stack(axis=1)(y0, y1))
    np.testing.assert_array_equal(
        np.asarray(outy), np.asarray(jnp.stack([y0, y1], axis=1)))

    print("KERNEL_OK")
</pallas_src>

<mosaic_0001>
module attributes {stable_mosaic.version = 11 : i64} {
  func.func @_stack_copy_kernel(%arg0: i32, %arg1: i32, %arg2: i32, %arg3: memref<2x1024xf32, #tpu.memory_space<vmem>>, %arg4: memref<2x1024xf32, #tpu.memory_space<vmem>>, %arg5: memref<2x1024xf32, #tpu.memory_space<vmem>>, %arg6: memref<2x1024xf32, #tpu.memory_space<vmem>>) attributes {dimension_semantics = [#tpu.dimension_semantics<parallel>, #tpu.dimension_semantics<parallel>, #tpu.dimension_semantics<arbitrary>], iteration_bounds = array<i64: 1, 1, 3>, scalar_prefetch = 0 : i64, scratch_operands = 0 : i64, tpu.core_type = #tpu.core_type<tc>, window_params = [{transform_indices = @transform_0, window_bounds = array<i64: 2, 1024>}, {transform_indices = @transform_1, window_bounds = array<i64: 2, 1024>}, {transform_indices = @transform_2, window_bounds = array<i64: 2, 1024>}, {transform_indices = @transform_3, window_bounds = array<i64: 2, 1024>}]} {
    %c0_i32 = arith.constant 0 : i32
    %0 = arith.cmpi eq, %arg2, %c0_i32 : i32
    %1 = arith.extui %0 : i1 to i32
    %c0_i32_0 = arith.constant 0 : i32
    %2 = arith.cmpi ne, %1, %c0_i32_0 : i32
    scf.if %2 {
      %c0 = arith.constant 0 : index
      %c0_3 = arith.constant 0 : index
      %9 = vector.load %arg3[%c0, %c0_3] : memref<2x1024xf32, #tpu.memory_space<vmem>>, vector<2x1024xf32>
      %c0_4 = arith.constant 0 : index
      %c0_5 = arith.constant 0 : index
      %10 = vector.load %arg6[%c0_4, %c0_5] : memref<2x1024xf32, #tpu.memory_space<vmem>>, vector<2x1024xf32>
      tpu.vector_store %arg6[%c0_4, %c0_5], %9 {strides = array<i32>} : memref<2x1024xf32, #tpu.memory_space<vmem>>, vector<2x1024xf32>,
    } else {
    }
    %c1_i32 = arith.constant 1 : i32
    %3 = arith.cmpi eq, %arg2, %c1_i32 : i32
    %4 = arith.extui %3 : i1 to i32
    %c0_i32_1 = arith.constant 0 : i32
    %5 = arith.cmpi ne, %4, %c0_i32_1 : i32
    scf.if %5 {
      %c0 = arith.constant 0 : index
      %c0_3 = arith.constant 0 : index
      %9 = vector.load %arg4[%c0, %c0_3] : memref<2x1024xf32, #tpu.memory_space<vmem>>, vector<2x1024xf32>
      %c0_4 = arith.constant 0 : index
      %c0_5 = arith.constant 0 : index
      %10 = vector.load %arg6[%c0_4, %c0_5] : memref<2x1024xf32, #tpu.memory_space<vmem>>, vector<2x1024xf32>
      tpu.vector_store %arg6[%c0_4, %c0_5], %9 {strides = array<i32>} : memref<2x1024xf32, #tpu.memory_space<vmem>>, vector<2x1024xf32>,
    } else {
    }
    %c2_i32 = arith.constant 2 : i32
    %6 = arith.cmpi eq, %arg2, %c2_i32 : i32
    %7 = arith.extui %6 : i1 to i32
    %c0_i32_2 = arith.constant 0 : i32
    %8 = arith.cmpi ne, %7, %c0_i32_2 : i32
    scf.if %8 {
      %c0 = arith.constant 0 : index
      %c0_3 = arith.constant 0 : index
      %9 = vector.load %arg5[%c0, %c0_3] : memref<2x1024xf32, #tpu.memory_space<vmem>>, vector<2x1024xf32>
      %c0_4 = arith.constant 0 : index
      %c0_5 = arith.constant 0 : index
      %10 = vector.load %arg6[%c0_4, %c0_5] : memref<2x1024xf32, #tpu.memory_space<vmem>>, vector<2x1024xf32>
      tpu.vector_store %arg6[%c0_4, %c0_5], %9 {strides = array<i32>} : memref<2x1024xf32, #tpu.memory_space<vmem>>, vector<2x1024xf32>,
    } else {
    }
    return
  }
  func.func @transform_0(%arg0: i32, %arg1: i32, %arg2: i32) -> (i32, i32) {
    %c0_i32 = arith.constant 0 : i32
    return %arg0, %arg1 : i32, i32
  }
  func.func @transform_1(%arg0: i32, %arg1: i32, %arg2: i32) -> (i32, i32) {
    %c0_i32 = arith.constant 0 : i32
    return %arg0, %arg1 : i32, i32
  }
  func.func @transform_2(%arg0: i32, %arg1: i32, %arg2: i32) -> (i32, i32) {
    %c0_i32 = arith.constant 0 : i32
    return %arg0, %arg1 : i32, i32
  }
  func.func @transform_3(%arg0: i32, %arg1: i32, %arg2: i32) -> (i32, i32) {
    %c1_i32 = arith.constant 1 : i32
    %0 = arith.muli %arg2, %c1_i32 : i32
    %1 = arith.addi %0, %arg1 : i32
    %c0_i32 = arith.constant 0 : i32
    return %arg0, %1 : i32, i32
  }
}

</mosaic_0001>

<llo_original>
// kernel: tpu_custom_call.1
$region0: #{tpu_custom_call.1}
  #allocation0 [shape = 'u32[]', space=smem, size = 0x4, offset = 0x4, fixed_abs, tag = 'smem constant byte address 0x4 - core index']
  #allocation1 [shape = 'u32[144,128]{1,0:T(1,128)}', space=vmem, size = 0x12000, scoped, tag = 'internal scratch']
  %s0 = inlined_call_operand.hbm [shape: f32[2,1024], index: 0, kind: input, shape index: {}]
  %s1 = inlined_call_operand.hbm [shape: f32[2,1024], index: 1, kind: input, shape index: {}]
  %s2 = inlined_call_operand.hbm [shape: f32[2,1024], index: 2, kind: input, shape index: {}]
  %s3 = inlined_call_operand.hbm [shape: f32[2,3072], index: 3, kind: output, shape index: {}]
  %s4 = sld [smem:[#allocation0]]
  $region69: #{tpu_custom_call.1} parent=0
    _
  %s6 = ssub.s32 1, %s4
  %s7 = scalar_select 0, %s6, %s4
  $region1: #{tpu_custom_call.1} parent=0
    #allocation2 [shape = 'u8[8192]{0}', space=vmem, size = 0x2000, scoped, tag = 'input window, operand 0, single buffered']
    #allocation3 [shape = 's32[2]{0}', space=sflag, size = 0x8, scoped, tag = 'scoped memory for tpu_custom_call.1']
    #allocation4 [shape = 's32[2]{0}', space=sflag, size = 0x8, scoped, tag = 'scoped memory for tpu_custom_call.1']
    #allocation5 [shape = 'u8[8192]{0}', space=vmem, size = 0x2000, scoped, tag = 'input window, operand 1, single buffered']
    #allocation6 [shape = 's32[1]{0}', space=sflag, size = 0x4, scoped, tag = 'scoped memory for tpu_custom_call.1']
    #allocation7 [shape = 'u8[8192]{0}', space=vmem, size = 0x2000, scoped, tag = 'input window, operand 2, single buffered']
    #allocation8 [shape = 'u8[16384]{0}', space=vmem, size = 0x4000, scoped, tag = 'output window, operand 0']
    %8 = vsyncpa [#allocation3], 0
    %9 = vsyncpa [#allocation6], 0
    %10 = vsyncpa [#allocation4], 0
    %s11 = scalar_lea.sflag [#allocation4], 1
    %12 = vsyncpa %s11, 0
    loop: start=0, step=1, limit=5
    $region2: #{tpu_custom_call.1} parent=1 // loop_pre_header
      _
    $region3: #{tpu_custom_call.1} parent=1 // loop_header
      %s14 = sphi 0, %s18
      %p15 = scmp.ge.s32.totalorder %s14, 5
      %s21 = sphi 0, %s40
      %s22 = sphi 0, %s36
      %s23 = sphi 0, %s32
      %s24 = sphi 0, %s21
      %s25 = sphi 0, %s22
      %s26 = sphi 0, %s23
      %s27 = sphi 0, %s24
      %s28 = sphi 0, %s25
      %s29 = sphi 0, %s26
      %s45 = sphi 0, %s47
      %s48 = sphi 0, %s45
      %s49 = sphi 0, %s48
      %s65 = sphi 0, %s49
      %s73 = sphi 0, %s75
      %s76 = sphi 0, %s73
      %s77 = sphi 0, %s76
      %s93 = sphi 0, %s77
      %s101 = sphi 0, %s103
      %s104 = sphi 0, %s101
      %s105 = sphi 0, %s104
      %s121 = sphi 0, %s105
      %s131 = sphi 0, %s133
      %s134 = sphi 0, %s131
      %s135 = sphi 0, %s134
      %s151 = sphi 0, %s135
    $region4: #{tpu_custom_call.1} parent=1 // loop_header_branch
      %17 = sbr.rel (%p15) target = $region8
    $region5: #{tpu_custom_call.1} parent=1 // loop_body
      %s19 = ssub.s32 %s14, 1
      %s20 = ssub.s32 %s14, 2
      %s30 = sadd.s32 1, %s23
      %p31 = scmp.ge.s32.totalorder %s30, 3
      %s32 = scalar_select %p31, 0, %s30
      %s33 = sadd.s32 1, %s22
      %s34 = scalar_select %p31, %s33, %s22
      %p35 = scmp.ge.s32.totalorder %s34, 1
      %s36 = scalar_select %p35, 0, %s34
      %s37 = sadd.s32 1, %s21
      %s38 = scalar_select %p35, %s37, %s21
      %p39 = scmp.ge.s32.totalorder %s38, 1
      %s40 = scalar_select %p39, 0, %s38
      %s41 = ssub.s32 %s21, %s40
      %s42 = ssub.s32 %s22, %s36
      %s43 = sor.u32 %s41, %s42
      %p44 = scmp.eq.s32.totalorder %s43, 0
      %s46 = sadd.s32 %s45, 1
      %s47 = scalar_select %p44, %s45, %s46
      %p50 = pneg %p44
      %p51 = scmp.eq.s32.totalorder %s14, 2
      %p52 = por %p50, %p51
      %p53 = scmp.ne.s32.totalorder %s45, %s48
      %p54 = scmp.eq.s32.totalorder %s14, 0
      %p55 = por %p53, %p54
      %p56 = scmp.ne.s32.totalorder %s45, %s48
      %p57 = scmp.eq.s32.totalorder %s19, 2
      %p58 = por %p56, %p57
      %p59 = scmp.ne.s32.totalorder %s48, %s49
      %p60 = scmp.eq.s32.totalorder %s19, 0
      %p61 = por %p59, %p60
      %p62 = scmp.ne.s32.totalorder %s48, %s49
      %p63 = scmp.eq.s32.totalorder %s20, 2
      %p64 = por %p62, %p63
      %p66 = scmp.ne.s32.totalorder %s49, %s65
      %p67 = scmp.eq.s32.totalorder %s20, 0
      %p68 = por %p66, %p67
      %s69 = ssub.s32 %s21, %s40
      %s70 = ssub.s32 %s22, %s36
      %s71 = sor.u32 %s69, %s70
      %p72 = scmp.eq.s32.totalorder %s71, 0
      %s74 = sadd.s32 %s73, 1
      %s75 = scalar_select %p72, %s73, %s74
      %p78 = pneg %p72
      %p79 = scmp.eq.s32.totalorder %s14, 2
      %p80 = por %p78, %p79
      %p81 = scmp.ne.s32.totalorder %s73, %s76
      %p82 = scmp.eq.s32.totalorder %s14, 0
      %p83 = por %p81, %p82
      %p84 = scmp.ne.s32.totalorder %s73, %s76
      %p85 = scmp.eq.s32.totalorder %s19, 2
      %p86 = por %p84, %p85
      %p87 = scmp.ne.s32.totalorder %s76, %s77
      %p88 = scmp.eq.s32.totalorder %s19, 0
      %p89 = por %p87, %p88
      %p90 = scmp.ne.s32.totalorder %s76, %s77
      %p91 = scmp.eq.s32.totalorder %s20, 2
      %p92 = por %p90, %p91
      %p94 = scmp.ne.s32.totalorder %s77, %s93
      %p95 = scmp.eq.s32.totalorder %s20, 0
      %p96 = por %p94, %p95
      %s97 = ssub.s32 %s21, %s40
      %s98 = ssub.s32 %s22, %s36
      %s99 = sor.u32 %s97, %s98
      %p100 = scmp.eq.s32.totalorder %s99, 0
      %s102 = sadd.s32 %s101, 1
      %s103 = scalar_select %p100, %s101, %s102
      %p106 = pneg %p100
      %p107 = scmp.eq.s32.totalorder %s14, 2
      %p108 = por %p106, %p107
      %p109 = scmp.ne.s32.totalorder %s101, %s104
      %p110 = scmp.eq.s32.totalorder %s14, 0
      %p111 = por %p109, %p110
      %p112 = scmp.ne.s32.totalorder %s101, %s104
      %p113 = scmp.eq.s32.totalorder %s19, 2
      %p114 = por %p112, %p113
      %p115 = scmp.ne.s32.totalorder %s104, %s105
      %p116 = scmp.eq.s32.totalorder %s19, 0
      %p117 = por %p115, %p116
      %p118 = scmp.ne.s32.totalorder %s104, %s105
      %p119 = scmp.eq.s32.totalorder %s20, 2
      %p120 = por %p118, %p119
      %p122 = scmp.ne.s32.totalorder %s105, %s121
      %p123 = scmp.eq.s32.totalorder %s20, 0
      %p124 = por %p122, %p123
      %s125 = sadd.s32 %s23, %s22
      %s126 = sadd.s32 %s32, %s36
      %s127 = ssub.s32 %s21, %s40
      %s128 = ssub.s32 %s125, %s126
      %s129 = sor.u32 %s127, %s128
      %p130 = scmp.eq.s32.totalorder %s129, 0
      %s132 = sadd.s32 %s131, 1
      %s133 = scalar_select %p130, %s131, %s132
      %p136 = pneg %p130
      %p137 = scmp.eq.s32.totalorder %s14, 2
      %p138 = por %p136, %p137
      %p139 = scmp.ne.s32.totalorder %s131, %s134
      %p140 = scmp.eq.s32.totalorder %s14, 0
      %p141 = por %p139, %p140
      %p142 = scmp.ne.s32.totalorder %s131, %s134
      %p143 = scmp.eq.s32.totalorder %s19, 2
      %p144 = por %p142, %p143
      %p145 = scmp.ne.s32.totalorder %s134, %s135
      %p146 = scmp.eq.s32.totalorder %s19, 0
      %p147 = por %p145, %p146
      %p148 = scmp.ne.s32.totalorder %s134, %s135
      %p149 = scmp.eq.s32.totalorder %s20, 2
      %p150 = por %p148, %p149
      %p152 = scmp.ne.s32.totalorder %s135, %s151
      %p153 = scmp.eq.s32.totalorder %s20, 0
      %p154 = por %p152, %p153
      %p155 = scmp.le.s32.totalorder 1, %s14
      %p156 = scmp.lt.s32.totalorder %s14, 4
      %p157 = pnand %p155, %p156
      %p158 = pneg %p157
      // Predicated region
      $region9: #{tpu_custom_call.1} parent=5 // pred_check
        _
      $region10: #{tpu_custom_call.1} parent=5 // pred_check_branch
        %160 = sbr.rel (%p157) target = $region12
      $region11: #{tpu_custom_call.1} parent=5 // pred_region
        %s161 = ssub.s32 %s14, 1
        // Predicated region
        $region13: #{tpu_custom_call.1} parent=11 // pred_check
          %p162 = pneg %p61
        $region14: #{tpu_custom_call.1} parent=11 // pred_check_branch
          %164 = sbr.rel (%p162) target = $region16
        $region15: #{tpu_custom_call.1} parent=11 // pred_region
          %s165 = smul.u32 8, %s25
          %s167 = ssub.s32 256, 256
          %168 = vsyncadd [#allocation3], %s167
          %s169 = smul.addr %s24, 8
          %s170 = sadd.s32 %s165, %s169
          %s171 = smul.addr %s170, 32
          %s172 = scalar_lea.hbm %s0, %s171
          %s174 = sshll.u32 [#allocation2], 4
          %s175 = int_to_ptr.vmem [resolvable:$true] %s174
          %177 = dma.hbm_to_vmem [thread:$0]  %s172, 256, %s175, [#allocation3]
        $region16: #{tpu_custom_call.1} parent=11 // pred_fallthru
          _
        // Predicated region
        $region17: #{tpu_custom_call.1} parent=11 // pred_check
          %p178 = pneg %p89
        $region18: #{tpu_custom_call.1} parent=11 // pred_check_branch
          %180 = sbr.rel (%p178) target = $region20
        $region19: #{tpu_custom_call.1} parent=11 // pred_region
          %s181 = smul.u32 8, %s25
          %s183 = ssub.s32 256, 256
          %184 = vsyncadd [#allocation6], %s183
          %s185 = smul.addr %s24, 8
          %s186 = sadd.s32 %s181, %s185
          %s187 = smul.addr %s186, 32
          %s188 = scalar_lea.hbm %s1, %s187
          %s190 = sshll.u32 [#allocation5], 4
          %s191 = int_to_ptr.vmem [resolvable:$true] %s190
          %193 = dma.hbm_to_vmem [thread:$0]  %s188, 256, %s191, [#allocation6]
        $region20: #{tpu_custom_call.1} parent=11 // pred_fallthru
          _
        // Predicated region
        $region21: #{tpu_custom_call.1} parent=11 // pred_check
          %p194 = pneg %p117
        $region22: #{tpu_custom_call.1} parent=11 // pred_check_branch
          %196 = sbr.rel (%p194) target = $region24
        $region23: #{tpu_custom_call.1} parent=11 // pred_region
          %s197 = smul.u32 8, %s25
          %s199 = ssub.s32 256, 256
          %200 = vsyncadd [#allocation6], %s199
          %s201 = smul.addr %s24, 8
          %s202 = sadd.s32 %s197, %s201
          %s203 = smul.addr %s202, 32
          %s204 = scalar_lea.hbm %s2, %s203
          %s206 = sshll.u32 [#allocation7], 4
          %s207 = int_to_ptr.vmem [resolvable:$true] %s206
          %209 = dma.hbm_to_vmem [thread:$0]  %s204, 256, %s207, [#allocation6]
        $region24: #{tpu_custom_call.1} parent=11 // pred_fallthru
          _
      $region12: #{tpu_custom_call.1} parent=5 // pred_fallthru
        _
      %p210 = scmp.lt.s32.totalorder %s14, 3
      // Predicated region
      $region25: #{tpu_custom_call.1} parent=5 // pred_check
        %p211 = pneg %p210
      $region26: #{tpu_custom_call.1} parent=5 // pred_check_branch
        %213 = sbr.rel (%p211) target = $region28
      $region27: #{tpu_custom_call.1} parent=5 // pred_region
        _
      $region28: #{tpu_custom_call.1} parent=5 // pred_fallthru
        _
      %p214 = scmp.le.s32.totalorder 1, %s14
      %p215 = scmp.lt.s32.totalorder %s14, 4
      %p216 = pnand %p214, %p215
      %p217 = pneg %p216
      // Predicated region
      $region29: #{tpu_custom_call.1} parent=5 // pred_check
        _
      $region30: #{tpu_custom_call.1} parent=5 // pred_check_branch
        %219 = sbr.rel (%p216) target = $region32
      $region31: #{tpu_custom_call.1} parent=5 // pred_region
        %s220 = ssub.s32 %s14, 1
        // Predicated region
        $region33: #{tpu_custom_call.1} parent=31 // pred_check
          %p221 = pneg %p61
        $region34: #{tpu_custom_call.1} parent=31 // pred_check_branch
          %223 = sbr.rel (%p221) target = $region36
        $region35: #{tpu_custom_call.1} parent=31 // pred_region
          %224 = dma.done [#allocation3], 256
        $region36: #{tpu_custom_call.1} parent=31 // pred_fallthru
          _
        // Predicated region
        $region37: #{tpu_custom_call.1} parent=31 // pred_check
          %p225 = pneg %p89
        $region38: #{tpu_custom_call.1} parent=31 // pred_check_branch
          %227 = sbr.rel (%p225) target = $region40
        $region39: #{tpu_custom_call.1} parent=31 // pred_region
          %228 = dma.done [#allocation6], 256
        $region40: #{tpu_custom_call.1} parent=31 // pred_fallthru
          _
        // Predicated region
        $region41: #{tpu_custom_call.1} parent=31 // pred_check
          %p229 = pneg %p117
        $region42: #{tpu_custom_call.1} parent=31 // pred_check_branch
          %231 = sbr.rel (%p229) target = $region44
        $region43: #{tpu_custom_call.1} parent=31 // pred_region
          %232 = dma.done [#allocation6], 256
        $region44: #{tpu_custom_call.1} parent=31 // pred_fallthru
          _
        %p233 = pneg %p61
        %p234 = pneg %p58
        %p235 = pneg %p89
        %p236 = pneg %p86
        %p237 = pneg %p117
        %p238 = pneg %p114
        %p239 = pneg %p147
        %p240 = pneg %p144
        %s241 = sand.u32 %s134, 1
        %s242 = scalar_lea.sflag [#allocation4], %s241
        %s243 = sand.u32 %s134, 1
        %s244 = smul.addr %s243, 16
        %s245 = scalar_lea.vmem [#allocation8], %s244
        %s246 = smul.u32 8, %s25
        %s247 = smul.u32 8, %s25
        %s248 = smul.u32 8, %s25
        %s249 = sadd.s32 %s26, %s25
        %s250 = smul.u32 8, %s249
        %p251 = scmp.eq.s32.totalorder %s26, 0
        // Predicated region
        $region45: #{tpu_custom_call.1} parent=31 // pred_check
          %p252 = pneg %p251
        $region46: #{tpu_custom_call.1} parent=31 // pred_check_branch
          %254 = sbr.rel (%p252) target = $region48
        $region47: #{tpu_custom_call.1} parent=31 // pred_region
          %v255 = vld [vmem:[#allocation2] sm:$0xff]
          %v256 = vld [vmem:[#allocation2 + $0x8] sm:$0xff]
          %257 = vst [vmem:[%s245] sm:$0xff] %v255
          %258 = vst [vmem:[%s245 + $0x8] sm:$0xff] %v256
        $region48: #{tpu_custom_call.1} parent=31 // pred_fallthru
          _
        %p259 = scmp.eq.s32.totalorder %s26, 1
        // Predicated region
        $region49: #{tpu_custom_call.1} parent=31 // pred_check
          %p260 = pneg %p259
        $region50: #{tpu_custom_call.1} parent=31 // pred_check_branch
          %262 = sbr.rel (%p260) target = $region52
        $region51: #{tpu_custom_call.1} parent=31 // pred_region
          %v263 = vld [vmem:[#allocation5] sm:$0xff]
          %v264 = vld [vmem:[#allocation5 + $0x8] sm:$0xff]
          %265 = vst [vmem:[%s245] sm:$0xff] %v263
          %266 = vst [vmem:[%s245 + $0x8] sm:$0xff] %v264
        $region52: #{tpu_custom_call.1} parent=31 // pred_fallthru
          _
        %p267 = scmp.eq.s32.totalorder %s26, 2
        // Predicated region
        $region53: #{tpu_custom_call.1} parent=31 // pred_check
          %p268 = pneg %p267
        $region54: #{tpu_custom_call.1} parent=31 // pred_check_branch
          %270 = sbr.rel (%p268) target = $region56
        $region55: #{tpu_custom_call.1} parent=31 // pred_region
          %v271 = vld [vmem:[#allocation7] sm:$0xff]
          %v272 = vld [vmem:[#allocation7 + $0x8] sm:$0xff]
          %273 = vst [vmem:[%s245] sm:$0xff] %v271
          %274 = vst [vmem:[%s245 + $0x8] sm:$0xff] %v272
        $region56: #{tpu_custom_call.1} parent=31 // pred_fallthru
          _
        %s275 = sand.u32 %s134, 1
        %s276 = scalar_lea.sflag [#allocation4], %s275
        %s277 = sand.u32 %s134, 1
        %s278 = smul.addr %s277, 16
        %s279 = scalar_lea.vmem [#allocation8], %s278
        // Predicated region
        $region57: #{tpu_custom_call.1} parent=31 // pred_check
          %p280 = pneg %p144
        $region58: #{tpu_custom_call.1} parent=31 // pred_check_branch
          %282 = sbr.rel (%p280) target = $region60
        $region59: #{tpu_custom_call.1} parent=31 // pred_region
          %s283 = sadd.s32 %s26, %s25
          %s284 = smul.u32 8, %s283
          %s286 = ssub.s32 256, 256
          %287 = vsyncadd %s276, %s286
          %s288 = smul.addr %s24, 24
          %s289 = sadd.s32 %s284, %s288
          %s290 = smul.addr %s289, 32
          %s291 = scalar_lea.hbm %s3, %s290
          %s293 = sshll.u32 %s279, 4
          %s294 = int_to_ptr.vmem [resolvable:$true] %s293
          %296 = dma.vmem_to_hbm [thread:$0]  %s294, 256, %s291, %s276
        $region60: #{tpu_custom_call.1} parent=31 // pred_fallthru
          _
      $region32: #{tpu_custom_call.1} parent=5 // pred_fallthru
        _
      %p297 = scmp.le.s32.totalorder 2, %s14
      // Predicated region
      $region61: #{tpu_custom_call.1} parent=5 // pred_check
        %p298 = pneg %p297
      $region62: #{tpu_custom_call.1} parent=5 // pred_check_branch
        %300 = sbr.rel (%p298) target = $region64
      $region63: #{tpu_custom_call.1} parent=5 // pred_region
        %s301 = ssub.s32 %s14, 2
        // Predicated region
        $region65: #{tpu_custom_call.1} parent=63 // pred_check
          %p302 = pneg %p150
        $region66: #{tpu_custom_call.1} parent=63 // pred_check_branch
          %304 = sbr.rel (%p302) target = $region68
        $region67: #{tpu_custom_call.1} parent=63 // pred_region
          %s305 = sand.u32 %s135, 1
          %s306 = scalar_lea.sflag [#allocation4], %s305
          %s307 = sand.u32 %s135, 1
          %s308 = smul.addr %s307, 16
          %s309 = scalar_lea.vmem [#allocation8], %s308
          %310 = dma.done %s306, 256
        $region68: #{tpu_custom_call.1} parent=63 // pred_fallthru
          _
      $region64: #{tpu_custom_call.1} parent=5 // pred_fallthru
        _
    $region6: #{tpu_custom_call.1} parent=1 // loop_footer
      %s18 = sadd.s32 1, %s14
    $region7: #{tpu_custom_call.1} parent=1 // loop_footer_branch
      %13 = sbr.rel target = $region3
    $region8: #{tpu_custom_call.1} parent=1 // loop_exit
      _
    %311 = vsyncpa [#allocation3], 1
    %s312 = scalar_lea.sflag [#allocation3], 1
    %313 = vsyncpa %s312, 1
    %314 = vsyncpa [#allocation6], 1
    %315 = vsyncpa [#allocation4], 1
    %s316 = scalar_lea.sflag [#allocation4], 1
    %317 = vsyncpa %s316, 1

</llo_original>
